<compile_context>
chip_gen: v7x
topology: tpu7x:2x2x1
jax: 0.10.0
libtpu: 0.0.40
codegen_flags: <defaults>
</compile_context>

<pallas_src>
import functools

import jax
import jax.numpy as jnp
from jax.experimental import pallas as pl
from jax.experimental.pallas import tpu as pltpu

LANE = 128
SUBLANE = 8


def _round_up(x, m):
    return (x + m - 1) // m * m


# ---------------- Fused Pallas kernel ----------------

def _fused_actor_kernel(x_ref, *refs, hidden_dims, eps):
    """refs = (w0, bgb0, w1, bgb1, ..., w_mu, b_mu, o_ref).

    w_i   : (K_i, out_pad_i) bf16  (zero-padded columns)
    bgb_i : (3, out_pad_i)   f32   rows = [bias, gamma, beta], padded lanes zero
    w_mu  : (h_pad, a_pad)   bf16
    b_mu  : (1, a_pad)       f32
    """
    o_ref = refs[-1]
    p = refs[:-1]
    n_hidden = len(hidden_dims)

    h = x_ref[...].astype(jnp.float32)
    for li in range(n_hidden):
        w_ref, bgb_ref = p[2 * li], p[2 * li + 1]
        # MXU in bf16 operands, f32 accumulation.
        y = jnp.dot(h.astype(w_ref.dtype), w_ref[...],
                    preferred_element_type=jnp.float32) + bgb_ref[0:1, :]
        # One-pass LayerNorm stats over the TRUE feature width: padded lanes of y
        # are exactly 0 (zero-padded W columns / bias), so only the divisor needs
        # the true width.  Clamp the uncentered variance at 0 (review concern).
        inv_n = 1.0 / float(hidden_dims[li])
        s1 = jnp.sum(y, axis=-1, keepdims=True)
        s2 = jnp.sum(y * y, axis=-1, keepdims=True)
        mean = s1 * inv_n
        var = jnp.maximum(s2 * inv_n - mean * mean, 0.0)
        y_hat = (y - mean) * jax.lax.rsqrt(var + eps)
        # gamma/beta are zero in padded lanes -> padded activations remain exactly 0.
        h = jnp.maximum(y_hat * bgb_ref[1:2, :] + bgb_ref[2:3, :], 0.0)

    w_mu_ref, b_mu_ref = p[2 * n_hidden], p[2 * n_hidden + 1]
    y = jnp.dot(h.astype(w_mu_ref.dtype), w_mu_ref[...],
                preferred_element_type=jnp.float32) + b_mu_ref[...]
    o_ref[...] = jnp.tanh(y).astype(o_ref.dtype)


# ---------------- Parameter init (mirrors the PyTorch __init__) ----------------

def init_actor_params(key, input_dims, hidden_dims, n_actions):
    """PyTorch-faithful init; weights stored as (in, out) so the kernel does x @ W."""
    neuron_list = [input_dims] + list(hidden_dims)
    layers = []
    for i in range(len(neuron_list) - 1):
        fan_in, fan_out = neuron_list[i], neuron_list[i + 1]
        # PyTorch: amp = 1/sqrt(weight.size()[0]) = 1/sqrt(out_features)
        amp = 1.0 / float(fan_out) ** 0.5
        key, kw, kb = jax.random.split(key, 3)
        w = jax.random.uniform(kw, (fan_in, fan_out), jnp.float32, -amp, amp)
        b = jax.random.uniform(kb, (1, fan_out), jnp.float32, -amp, amp)
        gamma = jnp.ones((1, fan_out), jnp.float32)   # LayerNorm weight
        beta = jnp.zeros((1, fan_out), jnp.float32)   # LayerNorm bias
        layers.append((w, b, gamma, beta))
    amp_mu = 0.003
    key, kw, kb = jax.random.split(key, 3)
    w_mu = jax.random.uniform(kw, (neuron_list[-1], n_actions), jnp.float32, -amp_mu, amp_mu)
    b_mu = jax.random.uniform(kb, (1, n_actions), jnp.float32, -amp_mu, amp_mu)
    return {"layers": layers, "mu": (w_mu, b_mu)}
    # TODO(synk): Adam optimizer, save()/load() checkpointing and .to(device)
    # placement from the PyTorch module are host-side concerns with no Pallas equivalent.


def _pad2(a, rows, cols):
    r, c = a.shape
    return jnp.zeros((rows, cols), a.dtype).at[:r, :c].set(a)


def pad_actor_params(params, input_dims, hidden_dims, n_actions,
                     matmul_dtype=jnp.bfloat16):
    """Kernel-ready parameters (done ONCE, outside the hot loop).

    * Weights zero-padded to lane-dense (128-multiple) output dims, cast to
      `matmul_dtype` (bf16: half the VMEM/DMA bytes, MXU-native).  W0 keeps its
      TRUE input width so observations need no feature-dim padding.
    * Per hidden layer, (bias, gamma, beta) are packed into one (3, out_pad) f32
      array (row 0=bias, 1=gamma, 2=beta); padded lanes stay exactly 0.
    Returns a flat tuple in kernel-argument order.
    """
    neuron_list = [input_dims] + list(hidden_dims)
    flat = []
    for i, (w, b, gamma, beta) in enumerate(params["layers"]):
        k_dim = neuron_list[i] if i == 0 else _round_up(neuron_list[i], LANE)
        out_pad = _round_up(neuron_list[i + 1], LANE)
        flat.append(_pad2(w, k_dim, out_pad).astype(matmul_dtype))
        bgb = jnp.zeros((3, out_pad), jnp.float32)
        bgb = bgb.at[0, :b.shape[1]].set(b[0])
        bgb = bgb.at[1, :gamma.shape[1]].set(gamma[0])
        bgb = bgb.at[2, :beta.shape[1]].set(beta[0])
        flat.append(bgb)
    w_mu, b_mu = params["mu"]
    h_pad = _round_up(neuron_list[-1], LANE)
    a_pad = _round_up(n_actions, LANE)
    flat.append(_pad2(w_mu, h_pad, a_pad).astype(matmul_dtype))
    flat.append(_pad2(b_mu, 1, a_pad))
    return tuple(flat)


# ---------------- Fused forward wrapper ----------------

def _pick_batch_tile(batch):
    # Big tiles amortize the ~0.35us per-grid-step overhead; cap at 512 rows.
    tb = min(512, _round_up(batch, SUBLANE))
    if batch >= 16:
        # Guarantee >= 2 grid steps so dimension_semantics=("parallel",) can shard
        # the batch across both TensorCores on v7x.
        tb = min(tb, _round_up(pl.cdiv(batch, 2), SUBLANE))
    return tb


def actor_forward(padded_params, observation, *, input_dims, hidden_dims, n_actions,
                  eps=1e-5):
    batch = observation.shape[0]
    a_pad = _round_up(n_actions, LANE)

    tb = _pick_batch_tile(batch)
    batch_pad = _round_up(batch, tb)

    # No feature-dim pad copy; row-only pad, and only when the batch tile needs it.
    x = observation.astype(jnp.float32)
    if batch_pad != batch:
        x = jnp.pad(x, ((0, batch_pad - batch), (0, 0)))

    grid = (batch_pad // tb,)
    # Observation block keeps its TRUE feature width (block dim == full array dim).
    in_specs = [pl.BlockSpec((tb, input_dims), lambda i: (i, 0))]
    # Weights/vectors: constant block index -> fetched once, resident in VMEM.
    # TODO(synk): for very wide hidden dims add pipeline_mode=pl.Buffered(1) to
    # these constant specs to drop the default double-buffer VMEM reserve.
    in_specs += [pl.BlockSpec(p.shape, lambda i: (0, 0)) for p in padded_params]
    out_specs = pl.BlockSpec((tb, a_pad), lambda i: (i, 0))

    kernel = functools.partial(_fused_actor_kernel,
                               hidden_dims=tuple(hidden_dims), eps=eps)

    # ---- VMEM budget: resident params + double-buffered activation tiles ----
    param_bytes = sum(p.size * p.dtype.itemsize for p in padded_params)
    dmax = max([input_dims, a_pad] + [_round_up(h, LANE) for h in hidden_dims])
    act_bytes = 2 * 2 * tb * dmax * 4            # 2 bufs x (in tile + out tile), f32
    # Generation-aware cap: ~32 MiB on v7x (64 MiB physical VMEM per TC),
    # up to 64 MiB on v5e/v6e (128 MiB physical).
    try:
        phys_vmem = int(pltpu.get_tpu_info().vmem_capacity_bytes)
    except Exception:
        phys_vmem = 64 << 20                     # conservative (v7x) fallback
    cap = max(32 << 20, min(100 << 20, phys_vmem // 2))
    vmem_limit = int(min(max(4 * (param_bytes + act_bytes) + (2 << 20), 8 << 20), cap))

    # Advisory cost hint so XLA schedules this small custom call sensibly.
    dims = [input_dims] + [_round_up(h, LANE) for h in hidden_dims] + [a_pad]
    flops = 2 * batch_pad * sum(dims[i] * dims[i + 1] for i in range(len(dims) - 1))
    transcendentals = batch_pad * (a_pad + len(hidden_dims))      # tanh + rsqrt
    bytes_accessed = (batch_pad * input_dims * 4 + param_bytes + batch_pad * a_pad * 4)

    out = pl.pallas_call(
        kernel,
        out_shape=jax.ShapeDtypeStruct((batch_pad, a_pad), jnp.float32),
        grid=grid,
        in_specs=in_specs,
        out_specs=out_specs,
        compiler_params=pltpu.CompilerParams(
            dimension_semantics=("parallel",),
            vmem_limit_bytes=vmem_limit),
        cost_estimate=pl.CostEstimate(flops=flops,
                                      transcendentals=transcendentals,
                                      bytes_accessed=bytes_accessed),
    )(x, *padded_params)
    return out[:batch, :n_actions]


# ---------------- Pure-JAX reference for sanity check ----------------

def actor_forward_ref(params, observation, eps=1e-5, matmul_dtype=jnp.float32):
    """PyTorch-semantics reference; pass matmul_dtype=bf16 to mimic the kernel's
    MXU operand precision (LayerNorm/ReLU/tanh always f32)."""
    temp = observation.astype(jnp.float32)
    for (w, b, gamma, beta) in params["layers"]:
        y = jnp.dot(temp.astype(matmul_dtype), w.astype(matmul_dtype),
                    preferred_element_type=jnp.float32) + b
        mean = jnp.mean(y, axis=-1, keepdims=True)
        var = jnp.mean(jnp.square(y - mean), axis=-1, keepdims=True)
        temp = jnp.maximum((y - mean) * jax.lax.rsqrt(var + eps) * gamma + beta, 0.0)
    w_mu, b_mu = params["mu"]
    y = jnp.dot(temp.astype(matmul_dtype), w_mu.astype(matmul_dtype),
                preferred_element_type=jnp.float32) + b_mu
    return jnp.tanh(y)


if __name__ == "__main__":
    # Small shapes consistent with the module: observation is (batch, input_dims)
    batch = 8
    input_dims = 16
    hidden_dims = [32, 32]
    n_actions = 8

    key = jax.random.PRNGKey(0)
    key, k_obs = jax.random.split(key)
    observation = jax.random.normal(k_obs, (batch, input_dims), jnp.float32)

    params = init_actor_params(key, input_dims, hidden_dims, n_actions)
    padded = pad_actor_params(params, input_dims, hidden_dims, n_actions)

    # TODO(synk): in an RL rollout, batch many environments' observations into ONE
    # call — at these shapes dispatch/DMA setup dominates, not compute.
    fwd = jax.jit(functools.partial(actor_forward,
                                    input_dims=input_dims,
                                    hidden_dims=tuple(hidden_dims),
                                    n_actions=n_actions))
    out = jax.block_until_ready(fwd(padded, observation))
    assert out.shape == (batch, n_actions)

    # Tight check vs a reference that mimics the kernel's bf16 matmul operands.
    ref_bf16 = actor_forward_ref(params, observation, matmul_dtype=jnp.bfloat16)
    assert jnp.allclose(out, ref_bf16, atol=1e-3, rtol=1e-2), \
        float(jnp.max(jnp.abs(out - ref_bf16)))
    # Looser check vs the full-f32 PyTorch-faithful reference.
    ref_f32 = actor_forward_ref(params, observation)
    assert jnp.allclose(out, ref_f32, atol=1e-2, rtol=1e-2), \
        float(jnp.max(jnp.abs(out - ref_f32)))

    print("KERNEL_OK")
</pallas_src>

<mosaic_0001>
module attributes {stable_mosaic.version = 11 : i64} {
  func.func @_fused_actor_kernel(%arg0: i32, %arg1: memref<8x16xf32, #tpu.memory_space<vmem>>, %arg2: memref<16x128xbf16, #tpu.memory_space<vmem>>, %arg3: memref<3x128xf32, #tpu.memory_space<vmem>>, %arg4: memref<128x128xbf16, #tpu.memory_space<vmem>>, %arg5: memref<3x128xf32, #tpu.memory_space<vmem>>, %arg6: memref<128x128xbf16, #tpu.memory_space<vmem>>, %arg7: memref<1x128xf32, #tpu.memory_space<vmem>>, %arg8: memref<8x128xf32, #tpu.memory_space<vmem>>) attributes {dimension_semantics = [#tpu.dimension_semantics<parallel>], iteration_bounds = array<i64: 1>, scalar_prefetch = 0 : i64, scratch_operands = 0 : i64, tpu.core_type = #tpu.core_type<tc>, window_params = [{transform_indices = @transform_0, window_bounds = array<i64: 8, 16>}, {pipeline_mode = #tpu.pipeline_mode<synchronous>, transform_indices = @transform_1, window_bounds = array<i64: 16, 128>}, {pipeline_mode = #tpu.pipeline_mode<synchronous>, transform_indices = @transform_2, window_bounds = array<i64: 3, 128>}, {pipeline_mode = #tpu.pipeline_mode<synchronous>, transform_indices = @transform_3, window_bounds = array<i64: 128, 128>}, {pipeline_mode = #tpu.pipeline_mode<synchronous>, transform_indices = @transform_4, window_bounds = array<i64: 3, 128>}, {pipeline_mode = #tpu.pipeline_mode<synchronous>, transform_indices = @transform_5, window_bounds = array<i64: 128, 128>}, {pipeline_mode = #tpu.pipeline_mode<synchronous>, transform_indices = @transform_6, window_bounds = array<i64: 1, 128>}, {transform_indices = @transform_7, window_bounds = array<i64: 8, 128>}]} {
    %c0 = arith.constant 0 : index
    %c0_0 = arith.constant 0 : index
    %0 = vector.load %arg1[%c0, %c0_0] : memref<8x16xf32, #tpu.memory_space<vmem>>, vector<8x16xf32>
    %1 = arith.truncf %0 : vector<8x16xf32> to vector<8x16xbf16>
    %c0_1 = arith.constant 0 : index
    %c0_2 = arith.constant 0 : index
    %2 = vector.load %arg2[%c0_1, %c0_2] : memref<16x128xbf16, #tpu.memory_space<vmem>>, vector<16x128xbf16>
    %cst = arith.constant dense<0.000000e+00> : vector<8x128xf32>
    %3 = tpu.matmul %1, %2, %cst {dimension_numbers = #tpu.dot_dimension_numbers<[1], [0], [0], [1], [0, 0, 1, 1], [], []>} : vector<8x16xbf16>, vector<16x128xbf16>, vector<8x128xf32> -> vector<8x128xf32>
    %c0_3 = arith.constant 0 : index
    %c0_4 = arith.constant 0 : index
    %4 = vector.load %arg3[%c0_3, %c0_4] : memref<3x128xf32, #tpu.memory_space<vmem>>, vector<1x128xf32>
    %5 = vector.broadcast %4 : vector<1x128xf32> to vector<8x128xf32>
    %6 = arith.addf %3, %5 : vector<8x128xf32>
    %cst_5 = arith.constant dense<0.000000e+00> : vector<8xf32>
    %7 = vector.multi_reduction <add>, %6, %cst_5 [1] : vector<8x128xf32> to vector<8xf32>
    %8 = vector.shape_cast %7 : vector<8xf32> to vector<8x1xf32>
    %9 = arith.mulf %6, %6 : vector<8x128xf32>
    %cst_6 = arith.constant dense<0.000000e+00> : vector<8xf32>
    %10 = vector.multi_reduction <add>, %9, %cst_6 [1] : vector<8x128xf32> to vector<8xf32>
    %11 = vector.shape_cast %10 : vector<8xf32> to vector<8x1xf32>
    %cst_7 = arith.constant 3.125000e-02 : f32
    %12 = vector.broadcast %cst_7 : f32 to vector<8x1xf32>
    %13 = arith.mulf %8, %12 : vector<8x1xf32>
    %cst_8 = arith.constant 3.125000e-02 : f32
    %14 = vector.broadcast %cst_8 : f32 to vector<8x1xf32>
    %15 = arith.mulf %11, %14 : vector<8x1xf32>
    %16 = arith.mulf %13, %13 : vector<8x1xf32>
    %17 = arith.subf %15, %16 : vector<8x1xf32>
    %cst_9 = arith.constant 0.000000e+00 : f32
    %18 = vector.broadcast %cst_9 : f32 to vector<8x1xf32>
    %19 = arith.maximumf %17, %18 : vector<8x1xf32>
    %20 = vector.broadcast %13 : vector<8x1xf32> to vector<8x128xf32>
    %21 = arith.subf %6, %20 : vector<8x128xf32>
    %cst_10 = arith.constant 9.99999974E-6 : f32
    %22 = vector.broadcast %cst_10 : f32 to vector<8x1xf32>
    %23 = arith.addf %19, %22 : vector<8x1xf32>
    %24 = math.rsqrt %23 : vector<8x1xf32>
    %25 = vector.broadcast %24 : vector<8x1xf32> to vector<8x128xf32>
    %26 = arith.mulf %21, %25 : vector<8x128xf32>
    %c1 = arith.constant 1 : index
    %c0_11 = arith.constant 0 : index
    %27 = vector.load %arg3[%c1, %c0_11] : memref<3x128xf32, #tpu.memory_space<vmem>>, vector<1x128xf32>
    %28 = vector.broadcast %27 : vector<1x128xf32> to vector<8x128xf32>
    %29 = arith.mulf %26, %28 : vector<8x128xf32>
    %c2 = arith.constant 2 : index
    %c0_12 = arith.constant 0 : index
    %30 = vector.load %arg3[%c2, %c0_12] : memref<3x128xf32, #tpu.memory_space<vmem>>, vector<1x128xf32>
    %31 = vector.broadcast %30 : vector<1x128xf32> to vector<8x128xf32>
    %32 = arith.addf %29, %31 : vector<8x128xf32>
    %cst_13 = arith.constant 0.000000e+00 : f32
    %33 = vector.broadcast %cst_13 : f32 to vector<8x128xf32>
    %34 = arith.maximumf %32, %33 : vector<8x128xf32>
    %35 = arith.truncf %34 : vector<8x128xf32> to vector<8x128xbf16>
    %c0_14 = arith.constant 0 : index
    %c0_15 = arith.constant 0 : index
    %36 = vector.load %arg4[%c0_14, %c0_15] : memref<128x128xbf16, #tpu.memory_space<vmem>>, vector<128x128xbf16>
    %cst_16 = arith.constant dense<0.000000e+00> : vector<8x128xf32>
    %37 = tpu.matmul %35, %36, %cst_16 {dimension_numbers = #tpu.dot_dimension_numbers<[1], [0], [0], [1], [0, 0, 1, 1], [], []>} : vector<8x128xbf16>, vector<128x128xbf16>, vector<8x128xf32> -> vector<8x128xf32>
    %c0_17 = arith.constant 0 : index
    %c0_18 = arith.constant 0 : index
    %38 = vector.load %arg5[%c0_17, %c0_18] : memref<3x128xf32, #tpu.memory_space<vmem>>, vector<1x128xf32>
    %39 = vector.broadcast %38 : vector<1x128xf32> to vector<8x128xf32>
    %40 = arith.addf %37, %39 : vector<8x128xf32>
    %cst_19 = arith.constant dense<0.000000e+00> : vector<8xf32>
    %41 = vector.multi_reduction <add>, %40, %cst_19 [1] : vector<8x128xf32> to vector<8xf32>
    %42 = vector.shape_cast %41 : vector<8xf32> to vector<8x1xf32>
    %43 = arith.mulf %40, %40 : vector<8x128xf32>
    %cst_20 = arith.constant dense<0.000000e+00> : vector<8xf32>
    %44 = vector.multi_reduction <add>, %43, %cst_20 [1] : vector<8x128xf32> to vector<8xf32>
    %45 = vector.shape_cast %44 : vector<8xf32> to vector<8x1xf32>
    %cst_21 = arith.constant 3.125000e-02 : f32
    %46 = vector.broadcast %cst_21 : f32 to vector<8x1xf32>
    %47 = arith.mulf %42, %46 : vector<8x1xf32>
    %cst_22 = arith.constant 3.125000e-02 : f32
    %48 = vector.broadcast %cst_22 : f32 to vector<8x1xf32>
    %49 = arith.mulf %45, %48 : vector<8x1xf32>
    %50 = arith.mulf %47, %47 : vector<8x1xf32>
    %51 = arith.subf %49, %50 : vector<8x1xf32>
    %cst_23 = arith.constant 0.000000e+00 : f32
    %52 = vector.broadcast %cst_23 : f32 to vector<8x1xf32>
    %53 = arith.maximumf %51, %52 : vector<8x1xf32>
    %54 = vector.broadcast %47 : vector<8x1xf32> to vector<8x128xf32>
    %55 = arith.subf %40, %54 : vector<8x128xf32>
    %cst_24 = arith.constant 9.99999974E-6 : f32
    %56 = vector.broadcast %cst_24 : f32 to vector<8x1xf32>
    %57 = arith.addf %53, %56 : vector<8x1xf32>
    %58 = math.rsqrt %57 : vector<8x1xf32>
    %59 = vector.broadcast %58 : vector<8x1xf32> to vector<8x128xf32>
    %60 = arith.mulf %55, %59 : vector<8x128xf32>
    %c1_25 = arith.constant 1 : index
    %c0_26 = arith.constant 0 : index
    %61 = vector.load %arg5[%c1_25, %c0_26] : memref<3x128xf32, #tpu.memory_space<vmem>>, vector<1x128xf32>
    %62 = vector.broadcast %61 : vector<1x128xf32> to vector<8x128xf32>
    %63 = arith.mulf %60, %62 : vector<8x128xf32>
    %c2_27 = arith.constant 2 : index
    %c0_28 = arith.constant 0 : index
    %64 = vector.load %arg5[%c2_27, %c0_28] : memref<3x128xf32, #tpu.memory_space<vmem>>, vector<1x128xf32>
    %65 = vector.broadcast %64 : vector<1x128xf32> to vector<8x128xf32>
    %66 = arith.addf %63, %65 : vector<8x128xf32>
    %cst_29 = arith.constant 0.000000e+00 : f32
    %67 = vector.broadcast %cst_29 : f32 to vector<8x128xf32>
    %68 = arith.maximumf %66, %67 : vector<8x128xf32>
    %69 = arith.truncf %68 : vector<8x128xf32> to vector<8x128xbf16>
    %c0_30 = arith.constant 0 : index
    %c0_31 = arith.constant 0 : index
    %70 = vector.load %arg6[%c0_30, %c0_31] : memref<128x128xbf16, #tpu.memory_space<vmem>>, vector<128x128xbf16>
    %cst_32 = arith.constant dense<0.000000e+00> : vector<8x128xf32>
    %71 = tpu.matmul %69, %70, %cst_32 {dimension_numbers = #tpu.dot_dimension_numbers<[1], [0], [0], [1], [0, 0, 1, 1], [], []>} : vector<8x128xbf16>, vector<128x128xbf16>, vector<8x128xf32> -> vector<8x128xf32>
    %c0_33 = arith.constant 0 : index
    %c0_34 = arith.constant 0 : index
    %72 = vector.load %arg7[%c0_33, %c0_34] : memref<1x128xf32, #tpu.memory_space<vmem>>, vector<1x128xf32>
    %73 = vector.broadcast %72 : vector<1x128xf32> to vector<8x128xf32>
    %74 = arith.addf %71, %73 : vector<8x128xf32>
    %75 = math.tanh %74 : vector<8x128xf32>
    %c0_35 = arith.constant 0 : index
    %c0_36 = arith.constant 0 : index
    %76 = vector.load %arg8[%c0_35, %c0_36] : memref<8x128xf32, #tpu.memory_space<vmem>>, vector<8x128xf32>
    tpu.vector_store %arg8[%c0_35, %c0_36], %75 {strides = array<i32>} : memref<8x128xf32, #tpu.memory_space<vmem>>, vector<8x128xf32>,
    return
  }
  func.func @transform_0(%arg0: i32) -> (i32, i32) {
    %c0_i32 = arith.constant 0 : i32
    %c0_i32_0 = arith.constant 0 : i32
    return %arg0, %c0_i32 : i32, i32
  }
  func.func @transform_1(%arg0: i32) -> (i32, i32) {
    %c0_i32 = arith.constant 0 : i32
    %c0_i32_0 = arith.constant 0 : i32
    %c0_i32_1 = arith.constant 0 : i32
    return %c0_i32, %c0_i32_0 : i32, i32
  }
  func.func @transform_2(%arg0: i32) -> (i32, i32) {
    %c0_i32 = arith.constant 0 : i32
    %c0_i32_0 = arith.constant 0 : i32
    %c0_i32_1 = arith.constant 0 : i32
    return %c0_i32, %c0_i32_0 : i32, i32
  }
  func.func @transform_3(%arg0: i32) -> (i32, i32) {
    %c0_i32 = arith.constant 0 : i32
    %c0_i32_0 = arith.constant 0 : i32
    %c0_i32_1 = arith.constant 0 : i32
    return %c0_i32, %c0_i32_0 : i32, i32
  }
  func.func @transform_4(%arg0: i32) -> (i32, i32) {
    %c0_i32 = arith.constant 0 : i32
    %c0_i32_0 = arith.constant 0 : i32
    %c0_i32_1 = arith.constant 0 : i32
    return %c0_i32, %c0_i32_0 : i32, i32
  }
  func.func @transform_5(%arg0: i32) -> (i32, i32) {
    %c0_i32 = arith.constant 0 : i32
    %c0_i32_0 = arith.constant 0 : i32
    %c0_i32_1 = arith.constant 0 : i32
    return %c0_i32, %c0_i32_0 : i32, i32
  }
  func.func @transform_6(%arg0: i32) -> (i32, i32) {
    %c0_i32 = arith.constant 0 : i32
    %c0_i32_0 = arith.constant 0 : i32
    %c0_i32_1 = arith.constant 0 : i32
    return %c0_i32, %c0_i32_0 : i32, i32
  }
  func.func @transform_7(%arg0: i32) -> (i32, i32) {
    %c0_i32 = arith.constant 0 : i32
    %c0_i32_0 = arith.constant 0 : i32
    return %arg0, %c0_i32 : i32, i32
  }
}

</mosaic_0001>

<llo_original>
// kernel: actor_forward.1
$region0: #{actor_forward.1}
  #allocation0 [shape = 'u32[]', space=smem, size = 0x4, offset = 0x4, fixed_abs, tag = 'smem constant byte address 0x4 - core index']
  #allocation1 [shape = 'u32[144,128]{1,0:T(1,128)}', space=vmem, size = 0x12000, scoped, tag = 'internal scratch']
  %s0 = inlined_call_operand.vmem [shape: f32[8,16], index: 0, kind: input, shape index: {}]
  %s1 = inlined_call_operand.hbm [shape: bf16[16,128], index: 1, kind: input, shape index: {}]
  %s2 = inlined_call_operand.hbm [shape: f32[3,128], index: 2, kind: input, shape index: {}]
  %s3 = inlined_call_operand.hbm [shape: bf16[128,128], index: 3, kind: input, shape index: {}]
  %s4 = inlined_call_operand.vmem [shape: f32[3,128], index: 4, kind: input, shape index: {}]
  %s5 = inlined_call_operand.hbm [shape: bf16[128,128], index: 5, kind: input, shape index: {}]
  %s6 = inlined_call_operand.vmem [shape: f32[1,128], index: 6, kind: input, shape index: {}]
  %s7 = inlined_call_operand.hbm [shape: f32[8,128], index: 7, kind: output, shape index: {}]
  %s8 = sld [smem:[#allocation0]]
  $region54: #{actor_forward.1} parent=0
    _
  %s10 = ssub.s32 1, %s8
  %s11 = scalar_select 0, %s10, %s8
  $region1: #{actor_forward.1} parent=0
    #allocation2 [shape = 'u8[4096]{0}', space=vmem, size = 0x1000, scoped, tag = 'input window, operand 1, single buffered']
    #allocation3 [shape = 's32[1]{0}', space=sflag, size = 0x4, scoped, tag = 'scoped memory for actor_forward.1']
    #allocation4 [shape = 's32[1]{0}', space=sflag, size = 0x4, scoped, tag = 'scoped memory for actor_forward.1']
    #allocation5 [shape = 'u8[2048]{0}', space=vmem, size = 0x800, scoped, tag = 'input window, operand 2, single buffered']
    #allocation6 [shape = 's32[1]{0}', space=sflag, size = 0x4, scoped, tag = 'scoped memory for actor_forward.1']
    #allocation7 [shape = 'u8[32768]{0}', space=vmem, size = 0x8000, scoped, tag = 'input window, operand 3, single buffered']
    #allocation8 [shape = 'u8[32768]{0}', space=vmem, size = 0x8000, scoped, tag = 'input window, operand 5, single buffered']
    #allocation9 [shape = 's32[1]{0}', space=sflag, size = 0x4, scoped, tag = 'scoped memory for actor_forward.1']
    #allocation10 [shape = 'u8[4096]{0}', space=vmem, size = 0x1000, scoped, tag = 'output window, operand 0, single buffered']
    %12 = vsyncpa [#allocation3], 0
    %13 = vsyncpa [#allocation6], 0
    %14 = vsyncpa [#allocation9], 0
    %15 = vsyncpa [#allocation4], 0
    // Predicated region
    $region2: #{actor_forward.1} parent=1 // pred_check
      _
    $region3: #{actor_forward.1} parent=1 // pred_check_branch
      %17 = sbr.rel (0) target = $region5
    $region4: #{actor_forward.1} parent=1 // pred_region
      _
    $region5: #{actor_forward.1} parent=1 // pred_fallthru
      _
    // Predicated region
    $region6: #{actor_forward.1} parent=1 // pred_check
      _
    $region7: #{actor_forward.1} parent=1 // pred_check_branch
      %19 = sbr.rel (0) target = $region9
    $region8: #{actor_forward.1} parent=1 // pred_region
      %s21 = ssub.s32 128, 128
      %22 = vsyncadd [#allocation3], %s21
      %s23 = sshll.u32 [#allocation2], 4
      %s24 = int_to_ptr.vmem [resolvable:$true] %s23
      %29 = dma.hbm_to_vmem [thread:$0]  %s1, 128, %s24, [#allocation3], 64, 64, 4
    $region9: #{actor_forward.1} parent=1 // pred_fallthru
      _
    // Predicated region
    $region10: #{actor_forward.1} parent=1 // pred_check
      _
    $region11: #{actor_forward.1} parent=1 // pred_check_branch
      %31 = sbr.rel (0) target = $region13
    $region12: #{actor_forward.1} parent=1 // pred_region
      %s33 = ssub.s32 64, 64
      %34 = vsyncadd [#allocation6], %s33
      %s36 = sshll.u32 [#allocation5], 4
      %s37 = int_to_ptr.vmem [resolvable:$true] %s36
      %39 = dma.hbm_to_vmem [thread:$0]  %s2, 64, %s37, [#allocation6]
    $region13: #{actor_forward.1} parent=1 // pred_fallthru
      _
    // Predicated region
    $region14: #{actor_forward.1} parent=1 // pred_check
      _
    $region15: #{actor_forward.1} parent=1 // pred_check_branch
      %41 = sbr.rel (0) target = $region17
    $region16: #{actor_forward.1} parent=1 // pred_region
      %s43 = ssub.s32 1024, 1024
      %44 = vsyncadd [#allocation6], %s43
      %s45 = sshll.u32 [#allocation7], 4
      %s46 = int_to_ptr.vmem [resolvable:$true] %s45
      %51 = dma.hbm_to_vmem [thread:$0]  %s3, 1024, %s46, [#allocation6], 64, 64, 4
    $region17: #{actor_forward.1} parent=1 // pred_fallthru
      _
    // Predicated region
    $region18: #{actor_forward.1} parent=1 // pred_check
      _
    $region19: #{actor_forward.1} parent=1 // pred_check_branch
      %53 = sbr.rel (0) target = $region21
    $region20: #{actor_forward.1} parent=1 // pred_region
      _
    $region21: #{actor_forward.1} parent=1 // pred_fallthru
      _
    // Predicated region
    $region22: #{actor_forward.1} parent=1 // pred_check
      _
    $region23: #{actor_forward.1} parent=1 // pred_check_branch
      %55 = sbr.rel (0) target = $region25
    $region24: #{actor_forward.1} parent=1 // pred_region
      %s57 = ssub.s32 1024, 1024
      %58 = vsyncadd [#allocation9], %s57
      %s59 = sshll.u32 [#allocation8], 4
      %s60 = int_to_ptr.vmem [resolvable:$true] %s59
      %65 = dma.hbm_to_vmem [thread:$0]  %s5, 1024, %s60, [#allocation9], 64, 64, 4
    $region25: #{actor_forward.1} parent=1 // pred_fallthru
      _
    // Predicated region
    $region26: #{actor_forward.1} parent=1 // pred_check
      _
    $region27: #{actor_forward.1} parent=1 // pred_check_branch
      %67 = sbr.rel (0) target = $region29
    $region28: #{actor_forward.1} parent=1 // pred_region
      _
    $region29: #{actor_forward.1} parent=1 // pred_fallthru
      _
    // Predicated region
    $region30: #{actor_forward.1} parent=1 // pred_check
      _
    $region31: #{actor_forward.1} parent=1 // pred_check_branch
      %69 = sbr.rel (0) target = $region33
    $region32: #{actor_forward.1} parent=1 // pred_region
      %70 = dma.done [#allocation3], 128
    $region33: #{actor_forward.1} parent=1 // pred_fallthru
      _
    // Predicated region
    $region34: #{actor_forward.1} parent=1 // pred_check
      _
    $region35: #{actor_forward.1} parent=1 // pred_check_branch
      %72 = sbr.rel (0) target = $region37
    $region36: #{actor_forward.1} parent=1 // pred_region
      %73 = dma.done [#allocation6], 64
    $region37: #{actor_forward.1} parent=1 // pred_fallthru
      _
    // Predicated region
    $region38: #{actor_forward.1} parent=1 // pred_check
      _
    $region39: #{actor_forward.1} parent=1 // pred_check_branch
      %75 = sbr.rel (0) target = $region41
    $region40: #{actor_forward.1} parent=1 // pred_region
      %76 = dma.done [#allocation6], 1024
    $region41: #{actor_forward.1} parent=1 // pred_fallthru
      _
    // Predicated region
    $region42: #{actor_forward.1} parent=1 // pred_check
      _
    $region43: #{actor_forward.1} parent=1 // pred_check_branch
      %78 = sbr.rel (0) target = $region45
    $region44: #{actor_forward.1} parent=1 // pred_region
      %79 = dma.done [#allocation9], 1024
    $region45: #{actor_forward.1} parent=1 // pred_fallthru
      _
    %v81 = vld [vmem:[%s0] sm:$0xff]
    %v82 = vpack.c.bf16 %v81, %v81
    %v83 = vld [vmem:[#allocation2] sm:$0xf]
    %v84 = vld [vmem:[#allocation2 + $0x4] sm:$0xf]
    %v85 = vld [vmem:[#allocation5] sm:$0x1]
    %v86 = vlaneseq
    %v87 = vshrl.u32 %v86, 7
    %v88 = vsub.s32 0, %v87
    %v89 = vrot.slane %v85, %v88
    %v92 = vunpack.c.l.b16 %v83
    %v93 = vunpack.c.l.b16 %v84
    %v94 = vpack.c.b16 %v93, %v92
    %vm96 = vcmask 130048
    %v98 = vsel %vm96, %v82, 0
    %100 = vmatprep.subr.bf16.mxu0 0
    %101 = vmatpush1.bf16.msra.mxu0 %v94
    %102 = vmatprep.subr.bf16.mxu0 0
    %103 = vmatpush1.bf16.msra.mxu0 0
    %104 = vmatprep.subr.bf16.mxu0 0
    %105 = vmatpush1.bf16.msra.mxu0 0
    %106 = vmatprep.subr.bf16.mxu0 0
    %107 = vmatpush1.bf16.msra.mxu0 0
    %108 = vmatprep.subr.bf16.mxu0 0
    %109 = vmatpush1.bf16.msra.mxu0 0
    %110 = vmatprep.subr.bf16.mxu0 0
    %111 = vmatpush1.bf16.msra.mxu0 0
    %112 = vmatprep.subr.bf16.mxu0 0
    %113 = vmatpush1.bf16.msra.mxu0 0
    %114 = vmatprep.subr.bf16.mxu0 0
    %115 = vmatpush1.bf16.msra.mxu0 0
    %116 = vmatprep.subr.bf16.mxu0 0
    %117 = vmatpush1.bf16.msra.mxu0 0
    %118 = vmatprep.subr.bf16.mxu0 0
    %119 = vmatpush1.bf16.msra.mxu0 0
    %120 = vmatprep.subr.bf16.mxu0 0
    %121 = vmatpush1.bf16.msra.mxu0 0
    %122 = vmatprep.subr.bf16.mxu0 0
    %123 = vmatpush1.bf16.msra.mxu0 0
    %124 = vmatprep.subr.bf16.mxu0 0
    %125 = vmatpush1.bf16.msra.mxu0 0
    %126 = vmatprep.subr.bf16.mxu0 0
    %127 = vmatpush1.bf16.msra.mxu0 0
    %128 = vmatprep.subr.bf16.mxu0 0
    %129 = vmatpush1.bf16.msra.mxu0 0
    %130 = vmatprep.subr.bf16.mxu0 0
    %131 = vmatpush1.bf16.msra.mxu0 0
    %132 = vmatprep.mubr.bf16.mxu0 0
    %133 = vmatmul.mubr.bf16.gmra.mrb[0].mxu0 %v98
    %v134 = vpop.f32.mrb[0].mxu0
    %v135 = vadd.f32 %v89, %v134
    %v136 = vpop.f32.mrb[0].mxu0
    %v137 = vpop.f32.mrb[0].mxu0
    %v138 = vpop.f32.mrb[0].mxu0
    %139 = vdwg.mxu0
    %140 = vadd.xlane.f32.xlu0 %v135
    %v141 = vpop.xlane.xlu0 %140
    %v142 = vmul.f32 %v135, %v135
    %143 = vadd.xlane.f32.xlu0 %v142
    %v144 = vpop.xlane.xlu0 %143
    %v145 = vmul.f32 %v141, 0.03125
    %v146 = vmul.f32 %v144, 0.03125
    %v147 = vmul.f32 %v145, %v145
    %v148 = vsub.f32 %v146, %v147
    %v149 = vmax.f32 %v148, 0.0
    %v150 = vsub.f32 %v135, %v145
    %v151 = vadd.f32 %v149, 1e-05
    %v152 = vrsqrt.pop %v151
    %v153 = vmul.f32 %v150, %v152
    %v154 = vld [vmem:[#allocation5 + $0x1] sm:$0x1]
    %v155 = vlaneseq
    %v156 = vshrl.u32 %v155, 7
    %v157 = vsub.s32 0, %v156
    %v158 = vrot.slane %v154, %v157
    %v159 = vmul.f32 %v153, %v158
    %v160 = vld [vmem:[#allocation5 + $0x2] sm:$0x1]
    %v161 = vlaneseq
    %v162 = vshrl.u32 %v161, 7
    %v163 = vsub.s32 0, %v162
    %v164 = vrot.slane %v160, %v163
    %v165 = vadd.f32 %v159, %v164
    %v166 = vmax.f32 %v165, 0.0
    %v167 = vpack.c.bf16 %v166, %v166
    %v168 = vld [vmem:[#allocation7] sm:$0xf]
    %v169 = vld [vmem:[#allocation7 + $0x4] sm:$0xf]
    %v170 = vld [vmem:[#allocation7 + $0x8] sm:$0xf]
    %v171 = vld [vmem:[#allocation7 + $0xc] sm:$0xf]
    %v172 = vld [vmem:[#allocation7 + $0x10] sm:$0xf]
    %v173 = vld [vmem:[#allocation7 + $0x14] sm:$0xf]
    %v174 = vld [vmem:[#allocation7 + $0x18] sm:$0xf]
    %v175 = vld [vmem:[#allocation7 + $0x1c] sm:$0xf]
    %v176 = vld [vmem:[#allocation7 + $0x20] sm:$0xf]
    %v177 = vld [vmem:[#allocation7 + $0x24] sm:$0xf]
    %v178 = vld [vmem:[#allocation7 + $0x28] sm:$0xf]
    %v179 = vld [vmem:[#allocation7 + $0x2c] sm:$0xf]
    %v180 = vld [vmem:[#allocation7 + $0x30] sm:$0xf]
    %v181 = vld [vmem:[#allocation7 + $0x34] sm:$0xf]
    %v182 = vld [vmem:[#allocation7 + $0x38] sm:$0xf]
    %v183 = vld [vmem:[#allocation7 + $0x3c] sm:$0xf]
    %v184 = vld [vmem:[%s4] sm:$0x1]
    %v185 = vlaneseq
    %v186 = vshrl.u32 %v185, 7
    %v187 = vsub.s32 0, %v186
    %v188 = vrot.slane %v184, %v187
    %v205 = vunpack.c.l.b16 %v168
    %v206 = vunpack.c.l.b16 %v169
    %v207 = vunpack.c.l.b16 %v170
    %v208 = vunpack.c.l.b16 %v171
    %v209 = vunpack.c.l.b16 %v172
    %v210 = vunpack.c.l.b16 %v173
    %v211 = vunpack.c.l.b16 %v174
    %v212 = vunpack.c.l.b16 %v175
    %v213 = vunpack.c.l.b16 %v176
    %v214 = vunpack.c.l.b16 %v177
    %v215 = vunpack.c.l.b16 %v178
    %v216 = vunpack.c.l.b16 %v179
    %v217 = vunpack.c.l.b16 %v180
    %v218 = vunpack.c.l.b16 %v181
    %v219 = vunpack.c.l.b16 %v182
    %v220 = vunpack.c.l.b16 %v183
    %v221 = vpack.c.b16 %v206, %v205
    %v222 = vpack.c.b16 %v208, %v207
    %v223 = vpack.c.b16 %v210, %v209
    %v224 = vpack.c.b16 %v212, %v211
    %v225 = vpack.c.b16 %v214, %v213
    %v226 = vpack.c.b16 %v216, %v215
    %v227 = vpack.c.b16 %v218, %v217
    %v228 = vpack.c.b16 %v220, %v219
    %237 = vmatprep.subr.bf16.mxu0 0
    %238 = vmatpush1.bf16.msra.mxu0 %v221
    %239 = vmatprep.subr.bf16.mxu0 0
    %240 = vmatpush1.bf16.msra.mxu0 %v222
    %241 = vmatprep.subr.bf16.mxu0 0
    %242 = vmatpush1.bf16.msra.mxu0 %v223
    %243 = vmatprep.subr.bf16.mxu0 0
    %244 = vmatpush1.bf16.msra.mxu0 %v224
    %245 = vmatprep.subr.bf16.mxu0 0
    %246 = vmatpush1.bf16.msra.mxu0 %v225
    %247 = vmatprep.subr.bf16.mxu0 0
    %248 = vmatpush1.bf16.msra.mxu0 %v226
    %249 = vmatprep.subr.bf16.mxu0 0
    %250 = vmatpush1.bf16.msra.mxu0 %v227
    %251 = vmatprep.subr.bf16.mxu0 0
    %252 = vmatpush1.bf16.msra.mxu0 %v228
    %253 = vmatprep.subr.bf16.mxu0 0
    %254 = vmatpush1.bf16.msra.mxu0 0
    %255 = vmatprep.subr.bf16.mxu0 0
    %256 = vmatpush1.bf16.msra.mxu0 0
    %257 = vmatprep.subr.bf16.mxu0 0
    %258 = vmatpush1.bf16.msra.mxu0 0
    %259 = vmatprep.subr.bf16.mxu0 0
    %260 = vmatpush1.bf16.msra.mxu0 0
    %261 = vmatprep.subr.bf16.mxu0 0
    %262 = vmatpush1.bf16.msra.mxu0 0
    %263 = vmatprep.subr.bf16.mxu0 0
    %264 = vmatpush1.bf16.msra.mxu0 0
    %265 = vmatprep.subr.bf16.mxu0 0
    %266 = vmatpush1.bf16.msra.mxu0 0
    %267 = vmatprep.subr.bf16.mxu0 0
    %268 = vmatpush1.bf16.msra.mxu0 0
    %269 = vmatprep.mubr.bf16.mxu0 0
    %270 = vmatmul.mubr.bf16.gmra.mrb[0].mxu0 %v167
    %v271 = vpop.f32.mrb[0].mxu0
    %v272 = vadd.f32 %v188, %v271
    %v273 = vpop.f32.mrb[0].mxu0
    %v274 = vpop.f32.mrb[0].mxu0
    %v275 = vpop.f32.mrb[0].mxu0
    %276 = vdwg.mxu0
    %277 = vadd.xlane.f32.xlu0 %v272
    %v278 = vpop.xlane.xlu0 %277
    %v279 = vmul.f32 %v272, %v272
    %280 = vadd.xlane.f32.xlu0 %v279
    %v281 = vpop.xlane.xlu0 %280
    %v282 = vmul.f32 %v278, 0.03125
    %v283 = vmul.f32 %v281, 0.03125
    %v284 = vmul.f32 %v282, %v282
    %v285 = vsub.f32 %v283, %v284
    %v286 = vmax.f32 %v285, 0.0
    %v287 = vsub.f32 %v272, %v282
    %v288 = vadd.f32 %v286, 1e-05
    %v289 = vrsqrt.pop %v288
    %v290 = vmul.f32 %v287, %v289
    %v291 = vld [vmem:[%s4 + $0x1] sm:$0x1]
    %v292 = vlaneseq
    %v293 = vshrl.u32 %v292, 7
    %v294 = vsub.s32 0, %v293
    %v295 = vrot.slane %v291, %v294
    %v296 = vmul.f32 %v290, %v295
    %v297 = vld [vmem:[%s4 + $0x2] sm:$0x1]
    %v298 = vlaneseq
    %v299 = vshrl.u32 %v298, 7
    %v300 = vsub.s32 0, %v299
    %v301 = vrot.slane %v297, %v300
    %v302 = vadd.f32 %v296, %v301
    %v303 = vmax.f32 %v302, 0.0
    %v304 = vpack.c.bf16 %v303, %v303
    %v305 = vld [vmem:[#allocation8] sm:$0xf]
    %v306 = vld [vmem:[#allocation8 + $0x4] sm:$0xf]
    %v307 = vld [vmem:[#allocation8 + $0x8] sm:$0xf]
    %v308 = vld [vmem:[#allocation8 + $0xc] sm:$0xf]
    %v309 = vld [vmem:[#allocation8 + $0x10] sm:$0xf]
    %v310 = vld [vmem:[#allocation8 + $0x14] sm:$0xf]
    %v311 = vld [vmem:[#allocation8 + $0x18] sm:$0xf]
    %v312 = vld [vmem:[#allocation8 + $0x1c] sm:$0xf]
    %v313 = vld [vmem:[#allocation8 + $0x20] sm:$0xf]
    %v314 = vld [vmem:[#allocation8 + $0x24] sm:$0xf]
    %v315 = vld [vmem:[#allocation8 + $0x28] sm:$0xf]
    %v316 = vld [vmem:[#allocation8 + $0x2c] sm:$0xf]
    %v317 = vld [vmem:[#allocation8 + $0x30] sm:$0xf]
    %v318 = vld [vmem:[#allocation8 + $0x34] sm:$0xf]
    %v319 = vld [vmem:[#allocation8 + $0x38] sm:$0xf]
    %v320 = vld [vmem:[#allocation8 + $0x3c] sm:$0xf]
    %v321 = vld [vmem:[%s6] sm:$0x1]
    %v323 = vlaneseq
    %v324 = vshrl.u32 %v323, 7
    %v325 = vsub.s32 0, %v324
    %v326 = vrot.slane %v321, %v325
    %v344 = vunpack.c.l.b16 %v305
    %v345 = vunpack.c.l.b16 %v306
    %v346 = vunpack.c.l.b16 %v307
    %v347 = vunpack.c.l.b16 %v308
    %v348 = vunpack.c.l.b16 %v309
    %v349 = vunpack.c.l.b16 %v310
    %v350 = vunpack.c.l.b16 %v311
    %v351 = vunpack.c.l.b16 %v312
    %v352 = vunpack.c.l.b16 %v313
    %v353 = vunpack.c.l.b16 %v314
    %v354 = vunpack.c.l.b16 %v315
    %v355 = vunpack.c.l.b16 %v316
    %v356 = vunpack.c.l.b16 %v317
    %v357 = vunpack.c.l.b16 %v318
    %v358 = vunpack.c.l.b16 %v319
    %v359 = vunpack.c.l.b16 %v320
    %v360 = vpack.c.b16 %v345, %v344
    %v361 = vpack.c.b16 %v347, %v346
    %v362 = vpack.c.b16 %v349, %v348
    %v363 = vpack.c.b16 %v351, %v350
    %v364 = vpack.c.b16 %v353, %v352
    %v365 = vpack.c.b16 %v355, %v354
    %v366 = vpack.c.b16 %v357, %v356
    %v367 = vpack.c.b16 %v359, %v358
    %376 = vmatprep.subr.bf16.mxu0 0
    %377 = vmatpush1.bf16.msra.mxu0 %v360
    %378 = vmatprep.subr.bf16.mxu0 0
    %379 = vmatpush1.bf16.msra.mxu0 %v361
    %380 = vmatprep.subr.bf16.mxu0 0
    %381 = vmatpush1.bf16.msra.mxu0 %v362
    %382 = vmatprep.subr.bf16.mxu0 0
    %383 = vmatpush1.bf16.msra.mxu0 %v363
    %384 = vmatprep.subr.bf16.mxu0 0
    %385 = vmatpush1.bf16.msra.mxu0 %v364
    %386 = vmatprep.subr.bf16.mxu0 0
    %387 = vmatpush1.bf16.msra.mxu0 %v365
    %388 = vmatprep.subr.bf16.mxu0 0
    %389 = vmatpush1.bf16.msra.mxu0 %v366
    %390 = vmatprep.subr.bf16.mxu0 0
    %391 = vmatpush1.bf16.msra.mxu0 %v367
    %392 = vmatprep.subr.bf16.mxu0 0
    %393 = vmatpush1.bf16.msra.mxu0 0
    %394 = vmatprep.subr.bf16.mxu0 0
    %395 = vmatpush1.bf16.msra.mxu0 0
    %396 = vmatprep.subr.bf16.mxu0 0
    %397 = vmatpush1.bf16.msra.mxu0 0
    %398 = vmatprep.subr.bf16.mxu0 0
    %399 = vmatpush1.bf16.msra.mxu0 0
    %400 = vmatprep.subr.bf16.mxu0 0
    %401 = vmatpush1.bf16.msra.mxu0 0
    %402 = vmatprep.subr.bf16.mxu0 0
    %403 = vmatpush1.bf16.msra.mxu0 0
    %404 = vmatprep.subr.bf16.mxu0 0
    %405 = vmatpush1.bf16.msra.mxu0 0
    %406 = vmatprep.subr.bf16.mxu0 0
    %407 = vmatpush1.bf16.msra.mxu0 0
    %408 = vmatprep.mubr.bf16.mxu0 0
    %409 = vmatmul.mubr.bf16.gmra.mrb[0].mxu0 %v304
    %v410 = vpop.f32.mrb[0].mxu0
    %v411 = vadd.f32 %v326, %v410
    %v412 = vpop.f32.mrb[0].mxu0
    %v413 = vpop.f32.mrb[0].mxu0
    %v414 = vpop.f32.mrb[0].mxu0
    %415 = vdwg.mxu0
    %v416 = vtanh.pop %v411
    %417 = vst [vmem:[#allocation10] sm:$0xff] %v416
    // Predicated region
    $region46: #{actor_forward.1} parent=1 // pred_check
      _
    $region47: #{actor_forward.1} parent=1 // pred_check_branch
      %419 = sbr.rel (0) target = $region49
    $region48: #{actor_forward.1} parent=1 // pred_region
      %s421 = ssub.s32 128, 128
      %422 = vsyncadd [#allocation4], %s421
      %s424 = sshll.u32 [#allocation10], 4
      %s425 = int_to_ptr.vmem [resolvable:$true] %s424
      %427 = dma.vmem_to_hbm [thread:$0]  %s425, 128, %s7, [#allocation4]
    $region49: #{actor_forward.1} parent=1 // pred_fallthru
      _
    // Predicated region
    $region50: #{actor_forward.1} parent=1 // pred_check
      _
    $region51: #{actor_forward.1} parent=1 // pred_check_branch
      %429 = sbr.rel (0) target = $region53
    $region52: #{actor_forward.1} parent=1 // pred_region
      %430 = dma.done [#allocation4], 128
    $region53: #{actor_forward.1} parent=1 // pred_fallthru
      _
    %431 = vsyncpa [#allocation3], 1
    %432 = vsyncpa [#allocation6], 1
    %433 = vsyncpa [#allocation9], 1
    %434 = vsyncpa [#allocation4], 1

</llo_original>
